<compile_context>
chip_gen: v6e
topology: v6e:2x2x1
jax: 0.10.0
libtpu: 0.0.40
codegen_flags: <defaults>
</compile_context>

<pallas_src>
import numpy as np
import jax
import jax.numpy as jnp
from jax.experimental import pallas as pl
from jax.experimental.pallas import tpu as pltpu

ROW_TILE = 128


# ----------------------------------------------------------------------------- kernels

def mlp_kernel(x_ref, w1_ref, b1_ref, w2_ref, b2_ref, o_ref):
    # x: (T, 8) (xyz zero-padded to 8 lanes), weights (in, out), biases (1, out)
    h = jnp.dot(x_ref[...], w1_ref[...], preferred_element_type=jnp.float32) + b1_ref[...]
    h = jnp.maximum(h, 0.0)
    o = jnp.dot(h, w2_ref[...], preferred_element_type=jnp.float32) + b2_ref[...]
    o_ref[...] = jnp.maximum(o, 0.0)


def conv_matmul_kernel(x_ref, w_ref, b_ref, o_ref):
    # x: (H*W, 9*Cin) im2col rows; w: (9*Cin, Cout); b: (1, Cout); o: (H*W, Cout)
    o_ref[...] = (jnp.dot(x_ref[...], w_ref[...], preferred_element_type=jnp.float32)
                  + b_ref[...])


def subm_kernel(x_ref, w_ref, g_ref, be_ref, mu_ref, var_ref, o_ref):
    # x: (T, 27*Cin) gathered neighborhood, w: (27*Cin, Cout), BN params (1, Cout)
    y = jnp.dot(x_ref[...], w_ref[...], preferred_element_type=jnp.float32)
    y = (y - mu_ref[...]) * jax.lax.rsqrt(var_ref[...] + 1e-3) * g_ref[...] + be_ref[...]
    o_ref[...] = jnp.maximum(y, 0.0)


def fused_attn_kernel(q_ref, pe_ref, kf_ref, kpe_ref,
                      twq_ref, twk_ref, twv_ref, two_ref,
                      tbq_ref, tbk_ref, tbv_ref, tbo_ref,
                      sf_ref, mask_ref,
                      cwq_ref, cwk_ref, cwv_ref, cwo_ref,
                      cbq_ref, cbk_ref, cbv_ref, cbo_ref,
                      o_ref, acc_ref):
    # Grid = (B, SEQ_LEN).  Per step: one single-head temporal MHA (L=1, batch of Nb rows)
    # accumulated into acc_ref; at the last seq step the masked cross-sensor MHA consumes
    # acc_ref as query and writes the output block.
    # q/pe: (Nb, E); kf/kpe: (Nb, K, E); temp weights (E, E) (transposed PyTorch), biases (1, E)
    # sf: (Nb, S, E) sampled image feats; mask: (Nb, S) additive (0 keep / -1e9 masked)
    s_id = pl.program_id(1)
    nb, k, e = kf_ref.shape
    scale = float(e) ** -0.5

    @pl.when(s_id == 0)
    def _init():
        acc_ref[...] = jnp.zeros_like(acc_ref)

    # --- temporal attention, sequence step s (query pos-embed add fused) ---
    q = (jnp.dot(q_ref[...] + pe_ref[...], twq_ref[...],
                 preferred_element_type=jnp.float32) + tbq_ref[...])           # (Nb, E)
    kv = (kf_ref[...] + kpe_ref[...]).reshape(nb * k, e)                        # key == value
    kp = (jnp.dot(kv, twk_ref[...], preferred_element_type=jnp.float32)
          + tbk_ref[...]).reshape(nb, k, e)
    vp = (jnp.dot(kv, twv_ref[...], preferred_element_type=jnp.float32)
          + tbv_ref[...]).reshape(nb, k, e)
    scores = jnp.sum(q[:, None, :] * kp, axis=-1) * scale                       # (Nb, K)
    scores = scores - jnp.max(scores, axis=-1, keepdims=True)
    p = jnp.exp(scores)
    p = p / jnp.sum(p, axis=-1, keepdims=True)
    ctx = jnp.sum(p[:, :, None] * vp, axis=1)                                   # (Nb, E)
    acc_ref[...] = acc_ref[...] + (jnp.dot(ctx, two_ref[...],
                                           preferred_element_type=jnp.float32)
                                   + tbo_ref[...])

    # --- cross-sensor attention on the accumulated temporal output (last seq step) ---
    @pl.when(s_id == pl.num_programs(1) - 1)
    def _cross():
        nb2, s_img, e2 = sf_ref.shape
        c_scale = float(e2) ** -0.5
        qc = (jnp.dot(acc_ref[...], cwq_ref[...], preferred_element_type=jnp.float32)
              + cbq_ref[...])
        kvc = sf_ref[...].reshape(nb2 * s_img, e2)                               # key == value
        kc = (jnp.dot(kvc, cwk_ref[...], preferred_element_type=jnp.float32)
              + cbk_ref[...]).reshape(nb2, s_img, e2)
        vc = (jnp.dot(kvc, cwv_ref[...], preferred_element_type=jnp.float32)
              + cbv_ref[...]).reshape(nb2, s_img, e2)
        sc = jnp.sum(qc[:, None, :] * kc, axis=-1) * c_scale + mask_ref[...]     # (Nb, S)
        sc = sc - jnp.max(sc, axis=-1, keepdims=True)
        pc = jnp.exp(sc)
        pc = pc / jnp.sum(pc, axis=-1, keepdims=True)
        ctxc = jnp.sum(pc[:, :, None] * vc, axis=1)                              # (Nb, E)
        o_ref[...] = (jnp.dot(ctxc, cwo_ref[...], preferred_element_type=jnp.float32)
                      + cbo_ref[...])


# ----------------------------------------------------------------------------- wrappers

def _pad_rows(n):
    return ((n + ROW_TILE - 1) // ROW_TILE) * ROW_TILE


def position_encoder_pallas(xyz_norm, w1, b1, w2, b2):
    n = xyz_norm.shape[0]
    c_half, c_out = w1.shape[1], w2.shape[1]
    n_pad = _pad_rows(n)
    # pad 3 -> 8 input lanes (zero rows in w1 keep the math identical); pad rows to tile
    x_pad = jnp.zeros((n_pad, 8), jnp.float32).at[:n, :3].set(xyz_norm)
    w1_pad = jnp.zeros((8, c_half), jnp.float32).at[:3, :].set(w1)
    out = pl.pallas_call(
        mlp_kernel,
        out_shape=jax.ShapeDtypeStruct((n_pad, c_out), jnp.float32),
        grid=(n_pad // ROW_TILE,),
        in_specs=[
            pl.BlockSpec((ROW_TILE, 8), lambda i: (i, 0)),
            pl.BlockSpec((8, c_half), lambda i: (0, 0)),
            pl.BlockSpec((1, c_half), lambda i: (0, 0)),
            pl.BlockSpec((c_half, c_out), lambda i: (0, 0)),
            pl.BlockSpec((1, c_out), lambda i: (0, 0)),
        ],
        out_specs=pl.BlockSpec((ROW_TILE, c_out), lambda i: (i, 0)),
        compiler_params=pltpu.CompilerParams(dimension_semantics=("parallel",)),
    )(x_pad, w1_pad, b1, w2, b2)
    return out[:n]


def conv3x3_pallas(x_nchw, w, b):
    # wrapper: NCHW -> NHWC, zero-pad, im2col (pure data movement on a tiny image);
    # kernel: single (H*W, 9*Cin) x (9*Cin, Cout) MXU matmul + bias per batch image.
    bsz, cin, hi, wi = x_nchw.shape
    cout = w.shape[0]
    x = jnp.transpose(x_nchw, (0, 2, 3, 1))
    xp = jnp.pad(x, ((0, 0), (1, 1), (1, 1), (0, 0)))
    cols = [xp[:, dy:dy + hi, dx:dx + wi, :] for dy in range(3) for dx in range(3)]
    im2col = jnp.concatenate(cols, axis=-1).reshape(bsz, hi * wi, 9 * cin)   # tap-major
    wt = jnp.transpose(w, (2, 3, 1, 0)).reshape(9 * cin, cout)               # (kh,kw,cin,cout)
    bb = b.reshape(1, cout)
    out = pl.pallas_call(
        conv_matmul_kernel,
        out_shape=jax.ShapeDtypeStruct((bsz, hi * wi, cout), jnp.float32),
        grid=(bsz,),
        in_specs=[
            pl.BlockSpec((None, hi * wi, 9 * cin), lambda i: (i, 0, 0)),
            pl.BlockSpec((9 * cin, cout), lambda i: (0, 0)),
            pl.BlockSpec((1, cout), lambda i: (0, 0)),
        ],
        out_specs=pl.BlockSpec((None, hi * wi, cout), lambda i: (i, 0, 0)),
        compiler_params=pltpu.CompilerParams(dimension_semantics=("parallel",)),
    )(im2col, wt, bb)
    return out.reshape(bsz, hi, wi, cout)    # NHWC only (unused NCHW output dropped)


def build_subm_gather(indices_np, n):
    # numpy glue (rulebook): per-voxel 27-neighborhood row table; missing neighbor -> n
    table = {tuple(int(v) for v in indices_np[r]): r for r in range(n)}
    offsets = [(dd, dh, dw) for dd in (-1, 0, 1) for dh in (-1, 0, 1) for dw in (-1, 0, 1)]
    gidx = np.full((n, 27), n, np.int32)
    for r in range(n):
        b0, d0, h0, w0 = (int(v) for v in indices_np[r])
        for t, (dd, dh, dw) in enumerate(offsets):
            gidx[r, t] = table.get((b0, d0 + dd, h0 + dh, w0 + dw), n)
    return gidx


def subm_conv_bn_relu_pallas(feats, gather_idx, w, gamma, beta, mean, var):
    # TODO(synk): for real voxel counts move the 27-tap gather in-kernel (scalar-prefetch
    # index table) to avoid materializing the 27x gathered tensor in HBM.
    n, cin = feats.shape
    k, _, cout = w.shape
    n_pad = _pad_rows(n)
    feats_pad = jnp.concatenate([feats, jnp.zeros((1, cin), feats.dtype)], axis=0)
    gathered = feats_pad[gather_idx].reshape(n, k * cin)
    gathered = jnp.pad(gathered, ((0, n_pad - n), (0, 0)))
    w2 = w.reshape(k * cin, cout)
    out = pl.pallas_call(
        subm_kernel,
        out_shape=jax.ShapeDtypeStruct((n_pad, cout), jnp.float32),
        grid=(n_pad // ROW_TILE,),
        in_specs=[
            pl.BlockSpec((ROW_TILE, k * cin), lambda i: (i, 0)),
            pl.BlockSpec((k * cin, cout), lambda i: (0, 0)),
            pl.BlockSpec((1, cout), lambda i: (0, 0)),
            pl.BlockSpec((1, cout), lambda i: (0, 0)),
            pl.BlockSpec((1, cout), lambda i: (0, 0)),
            pl.BlockSpec((1, cout), lambda i: (0, 0)),
        ],
        out_specs=pl.BlockSpec((ROW_TILE, cout), lambda i: (i, 0)),
        compiler_params=pltpu.CompilerParams(dimension_semantics=("parallel",)),
    )(gathered, w2, gamma, beta, mean, var)
    return out[:n]


def fused_attn_pallas(feats, pe, knn_feat, knn_pe, sampled_feat, add_mask, tp, cp):
    # feats/pe: (B, Nb, E); knn_feat/knn_pe: (SEQ_LEN, B, Nb, K, E)
    # sampled_feat: (B, Nb, S, E); add_mask: (B, Nb, S) additive f32
    # temporal params stacked per-seq: w* (SEQ_LEN, E, E), b* (SEQ_LEN, 1, E)
    seq_len, bsz, nb, k, e = knn_feat.shape
    s_img = sampled_feat.shape[2]
    q_spec = pl.BlockSpec((None, nb, e), lambda b, s: (b, 0, 0))
    knn_spec = pl.BlockSpec((None, None, nb, k, e), lambda b, s: (s, b, 0, 0, 0))
    tw_spec = pl.BlockSpec((None, e, e), lambda b, s: (s, 0, 0))
    tb_spec = pl.BlockSpec((None, 1, e), lambda b, s: (s, 0, 0))
    sf_spec = pl.BlockSpec((None, nb, s_img, e), lambda b, s: (b, 0, 0, 0))
    m_spec = pl.BlockSpec((None, nb, s_img), lambda b, s: (b, 0, 0))
    cw_spec = pl.BlockSpec((e, e), lambda b, s: (0, 0))
    cb_spec = pl.BlockSpec((1, e), lambda b, s: (0, 0))
    return pl.pallas_call(
        fused_attn_kernel,
        out_shape=jax.ShapeDtypeStruct((bsz, nb, e), jnp.float32),
        grid=(bsz, seq_len),
        in_specs=[q_spec, q_spec, knn_spec, knn_spec,
                  tw_spec, tw_spec, tw_spec, tw_spec,
                  tb_spec, tb_spec, tb_spec, tb_spec,
                  sf_spec, m_spec,
                  cw_spec, cw_spec, cw_spec, cw_spec,
                  cb_spec, cb_spec, cb_spec, cb_spec],
        out_specs=pl.BlockSpec((None, nb, e), lambda b, s: (b, 0, 0)),
        scratch_shapes=[pltpu.VMEM((nb, e), jnp.float32)],
        compiler_params=pltpu.CompilerParams(
            dimension_semantics=("parallel", "arbitrary")),
    )(feats, pe, knn_feat, knn_pe,
      tp['wq'], tp['wk'], tp['wv'], tp['wo'],
      tp['bq'], tp['bk'], tp['bv'], tp['bo'],
      sampled_feat, add_mask,
      cp['wq'], cp['wk'], cp['wv'], cp['wo'],
      cp['bq'], cp['bk'], cp['bv'], cp['bo'])


def init_mha_params(key, e):
    ks = jax.random.split(key, 4)
    in_proj = 0.05 * jax.random.normal(ks[0], (3 * e, e), jnp.float32)   # PyTorch (3E, E)
    in_bias = 0.05 * jax.random.normal(ks[1], (3 * e,), jnp.float32)
    wo = 0.05 * jax.random.normal(ks[2], (e, e), jnp.float32)
    bo = 0.05 * jax.random.normal(ks[3], (e,), jnp.float32)
    wq, wk, wv = in_proj[:e], in_proj[e:2 * e], in_proj[2 * e:]
    return dict(wq=wq.T, wk=wk.T, wv=wv.T, wo=wo.T,
                bq=in_bias[:e].reshape(1, e), bk=in_bias[e:2 * e].reshape(1, e),
                bv=in_bias[2 * e:].reshape(1, e), bo=bo.reshape(1, e))


def stack_mha_params(param_list):
    return {k: jnp.stack([p[k] for p in param_list], axis=0) for k in param_list[0]}


# ----------------------------------------------------------------------------- STFTRLayer

def stftr_layer_forward(layer_params, feats_bne, pe_bne, knn_feat, knn_pe,
                        sampled_feat, add_mask, valid_rows_np, indices_bn4):
    # temporal attention (accumulated over SEQ_LEN) fused with masked cross-sensor
    # attention in a single gridded Pallas kernel; dropout is eval-mode no-op.
    cs_out = fused_attn_pallas(feats_bne, pe_bne, knn_feat, knn_pe, sampled_feat,
                               add_mask, layer_params['temp_attn'],
                               layer_params['cross_attn'])
    # per-batch valid-row selection (same semantics as PyTorch `valid`); indices were
    # precomputed on host from the input mask so no device sync happens here.  Rows the
    # reference drops before cross-attn are dropped here after it — per-row attention is
    # independent so the kept rows are identical.
    feats_out, idx_out = [], []
    for b, rows in enumerate(valid_rows_np):
        rows_j = jnp.asarray(rows, jnp.int32)
        feats_out.append(jnp.take(cs_out[b], rows_j, axis=0))
        idx_out.append(jnp.take(indices_bn4[b], rows_j, axis=0))
    return jnp.concatenate(feats_out, 0), jnp.concatenate(idx_out, 0)


# ----------------------------------------------------------------------------- main

if __name__ == "__main__":
    rng = jax.random.PRNGKey(0)
    keys = iter(jax.random.split(rng, 64))

    # config (stf_cfg)
    B, SEQ_LEN, NUM_LAYERS = 2, 2, 1
    C = 32              # v_num_channels (pts_channels)
    HID = 32            # hidden_channels (== C, required by residual / cross-attn)
    CIMG = 8            # img_channels
    K = 8               # knn_samples_num
    S_IMG = 8           # img_samples_num
    HI = WI = 16
    SPATIAL = (8, 16, 16)
    NB = 48             # voxels per batch (fixed -> static shapes, no host filtering)
    N = B * NB

    # --- sparse voxel query (unique coords, exactly NB per batch, batch-major order) ---
    DHW = SPATIAL[0] * SPATIAL[1] * SPATIAL[2]
    coords = []
    for b in range(B):
        flat = jax.random.choice(next(keys), DHW, shape=(NB,), replace=False)
        d = (flat // (SPATIAL[1] * SPATIAL[2])).astype(jnp.int32)
        h = ((flat // SPATIAL[2]) % SPATIAL[1]).astype(jnp.int32)
        w = (flat % SPATIAL[2]).astype(jnp.int32)
        coords.append(jnp.stack([jnp.full((NB,), b, jnp.int32), d, h, w], axis=1))
    pts_indices = jnp.concatenate(coords, axis=0)                       # (N, 4)
    pts_feats = 0.1 * jax.random.normal(next(keys), (N, C), jnp.float32)

    # --- synthetic knn_sampling outputs (external helper undefined in source) ---
    # TODO(synk): real knn_sampling does a KNN search over previous-frame voxels.
    # stored directly in batched (SEQ_LEN, B, NB, K, C) layout (== permute(1,0,2) applied)
    knn_feat = 0.1 * jax.random.normal(next(keys), (SEQ_LEN, B, NB, K, C), jnp.float32)
    knn_pe = 0.1 * jax.random.normal(next(keys), (SEQ_LEN, B, NB, K, C), jnp.float32)

    # --- parameters (deterministic synthetic init) ---
    w1 = 0.2 * jax.random.normal(next(keys), (3, C // 2), jnp.float32)
    b1 = 0.05 * jax.random.normal(next(keys), (1, C // 2), jnp.float32)
    w2 = 0.2 * jax.random.normal(next(keys), (C // 2, C), jnp.float32)
    b2 = 0.05 * jax.random.normal(next(keys), (1, C), jnp.float32)

    conv_w = 0.1 * jax.random.normal(next(keys), (HID, CIMG, 3, 3), jnp.float32)
    conv_b = 0.05 * jax.random.normal(next(keys), (HID,), jnp.float32)

    subm_w = 0.05 * jax.random.normal(next(keys), (27, C, HID), jnp.float32)
    bn_gamma = jnp.ones((1, HID), jnp.float32)
    bn_beta = jnp.zeros((1, HID), jnp.float32)
    bn_mean = jnp.zeros((1, HID), jnp.float32)
    bn_var = jnp.ones((1, HID), jnp.float32)

    layer_params = {
        'temp_attn': stack_mha_params([init_mha_params(next(keys), C)
                                       for _ in range(SEQ_LEN)]),
        'cross_attn': init_mha_params(next(keys), HID),
    }

    # --- image features + synthetic img_feats_sampling coords/mask ---
    img = 0.1 * jax.random.normal(next(keys), (B, CIMG, HI, WI), jnp.float32)
    samp_yx = jax.random.randint(next(keys), (B, NB, S_IMG, 2), 0, HI)
    samp_mask = jax.random.bernoulli(next(keys), 0.7, (B, NB, S_IMG))

    # ====================== forward pass ======================
    # 1) make_position_embedding  (Pallas MLP, row-tiled grid)
    norm_idx = pts_indices[:, 1:].astype(jnp.float32) / jnp.array(SPATIAL, jnp.float32)
    pts_query_pe = position_encoder_pallas(norm_idx, w1, b1, w2, b2)            # (N, C)

    # 2) shared_conv_img  (Pallas im2col matmul 3x3 conv, grid over batch)
    img_conv_nhwc = conv3x3_pallas(img, conv_w, conv_b)                         # (B,HI,WI,HID)

    # 3) shared_conv_pts  (SubMConv3d + BN + ReLU; rulebook in numpy, matmul in Pallas)
    gather_idx = jnp.asarray(build_subm_gather(np.asarray(pts_indices), N))
    sp_feats = subm_conv_bn_relu_pallas(pts_feats, gather_idx, subm_w,
                                        bn_gamma, bn_beta, bn_mean, bn_var)     # (N, HID)

    # 4) img_feats_sampling (synthetic: gather convolved image features at sampled pixels)
    # TODO(synk): real img_feats_sampling does camera projection; undefined in source.
    ys, xs = samp_yx[..., 0], samp_yx[..., 1]
    sampled_feat = jax.vmap(lambda im, y, x: im[y, x, :])(img_conv_nhwc, ys, xs)  # (B,NB,S,HID)
    add_mask = jnp.where(samp_mask, 0.0, -1e9).astype(jnp.float32)                # (B,NB,S)

    # valid-row indices precomputed ONCE from the input mask (single host sync, outside
    # the kernel-enqueue path) — replaces the per-batch/per-layer np.where syncs.
    mask_np = np.asarray(samp_mask)
    valid_rows_np = [np.where(mask_np[b].sum(axis=1) > 0)[0].astype(np.int32)
                     for b in range(B)]

    feats_bne = sp_feats.reshape(B, NB, HID)
    pe_bne = pts_query_pe.reshape(B, NB, C)
    indices_bn4 = pts_indices.reshape(B, NB, 4)

    # 5) STFTRLayer stack
    # TODO(synk): for NUM_LAYERS > 1 the reference re-sparsifies the valid-filtered output
    # between layers (variable N); with NUM_LAYERS=1 the semantics are exact.
    feats_out, idx_out = None, None
    for _ in range(NUM_LAYERS):
        feats_out, idx_out = stftr_layer_forward(layer_params, feats_bne, pe_bne,
                                                 knn_feat, knn_pe, sampled_feat,
                                                 add_mask, valid_rows_np, indices_bn4)

    # TODO(synk): original forward returns undefined `fuse_out`; we return the fused
    # sparse voxel features (features + indices) produced by the last layer instead.
    jax.block_until_ready((feats_out, idx_out))
    print("KERNEL_OK")
</pallas_src>

<mosaic_0001>
module attributes {stable_mosaic.version = 11 : i64} {
  func.func @mlp_kernel(%arg0: i32, %arg1: memref<128x8xf32, #tpu.memory_space<vmem>>, %arg2: memref<8x16xf32, #tpu.memory_space<vmem>>, %arg3: memref<1x16xf32, #tpu.memory_space<vmem>>, %arg4: memref<16x32xf32, #tpu.memory_space<vmem>>, %arg5: memref<1x32xf32, #tpu.memory_space<vmem>>, %arg6: memref<128x32xf32, #tpu.memory_space<vmem>>) attributes {dimension_semantics = [#tpu.dimension_semantics<parallel>], iteration_bounds = array<i64: 1>, scalar_prefetch = 0 : i64, scratch_operands = 0 : i64, tpu.core_type = #tpu.core_type<tc>, window_params = [{transform_indices = @transform_0, window_bounds = array<i64: 128, 8>}, {pipeline_mode = #tpu.pipeline_mode<synchronous>, transform_indices = @transform_1, window_bounds = array<i64: 8, 16>}, {pipeline_mode = #tpu.pipeline_mode<synchronous>, transform_indices = @transform_2, window_bounds = array<i64: 1, 16>}, {pipeline_mode = #tpu.pipeline_mode<synchronous>, transform_indices = @transform_3, window_bounds = array<i64: 16, 32>}, {pipeline_mode = #tpu.pipeline_mode<synchronous>, transform_indices = @transform_4, window_bounds = array<i64: 1, 32>}, {transform_indices = @transform_5, window_bounds = array<i64: 128, 32>}]} {
    %c0 = arith.constant 0 : index
    %c0_0 = arith.constant 0 : index
    %0 = vector.load %arg1[%c0, %c0_0] : memref<128x8xf32, #tpu.memory_space<vmem>>, vector<128x8xf32>
    %c0_1 = arith.constant 0 : index
    %c0_2 = arith.constant 0 : index
    %1 = vector.load %arg2[%c0_1, %c0_2] : memref<8x16xf32, #tpu.memory_space<vmem>>, vector<8x16xf32>
    %cst = arith.constant dense<0.000000e+00> : vector<128x16xf32>
    %2 = tpu.matmul %0, %1, %cst {dimension_numbers = #tpu.dot_dimension_numbers<[1], [0], [0], [1], [0, 0, 1, 1], [], []>} : vector<128x8xf32>, vector<8x16xf32>, vector<128x16xf32> -> vector<128x16xf32>
    %c0_3 = arith.constant 0 : index
    %c0_4 = arith.constant 0 : index
    %3 = vector.load %arg3[%c0_3, %c0_4] : memref<1x16xf32, #tpu.memory_space<vmem>>, vector<1x16xf32>
    %4 = vector.broadcast %3 : vector<1x16xf32> to vector<128x16xf32>
    %5 = arith.addf %2, %4 : vector<128x16xf32>
    %cst_5 = arith.constant 0.000000e+00 : f32
    %6 = vector.broadcast %cst_5 : f32 to vector<128x16xf32>
    %7 = arith.maximumf %5, %6 : vector<128x16xf32>
    %c0_6 = arith.constant 0 : index
    %c0_7 = arith.constant 0 : index
    %8 = vector.load %arg4[%c0_6, %c0_7] : memref<16x32xf32, #tpu.memory_space<vmem>>, vector<16x32xf32>
    %cst_8 = arith.constant dense<0.000000e+00> : vector<128x32xf32>
    %9 = tpu.matmul %7, %8, %cst_8 {dimension_numbers = #tpu.dot_dimension_numbers<[1], [0], [0], [1], [0, 0, 1, 1], [], []>} : vector<128x16xf32>, vector<16x32xf32>, vector<128x32xf32> -> vector<128x32xf32>
    %c0_9 = arith.constant 0 : index
    %c0_10 = arith.constant 0 : index
    %10 = vector.load %arg5[%c0_9, %c0_10] : memref<1x32xf32, #tpu.memory_space<vmem>>, vector<1x32xf32>
    %11 = vector.broadcast %10 : vector<1x32xf32> to vector<128x32xf32>
    %12 = arith.addf %9, %11 : vector<128x32xf32>
    %cst_11 = arith.constant 0.000000e+00 : f32
    %13 = vector.broadcast %cst_11 : f32 to vector<128x32xf32>
    %14 = arith.maximumf %12, %13 : vector<128x32xf32>
    %c0_12 = arith.constant 0 : index
    %c0_13 = arith.constant 0 : index
    %15 = vector.load %arg6[%c0_12, %c0_13] : memref<128x32xf32, #tpu.memory_space<vmem>>, vector<128x32xf32>
    tpu.vector_store %arg6[%c0_12, %c0_13], %14 {strides = array<i32>} : memref<128x32xf32, #tpu.memory_space<vmem>>, vector<128x32xf32>,
    return
  }
  func.func @transform_0(%arg0: i32) -> (i32, i32) {
    %c0_i32 = arith.constant 0 : i32
    %c0_i32_0 = arith.constant 0 : i32
    return %arg0, %c0_i32 : i32, i32
  }
  func.func @transform_1(%arg0: i32) -> (i32, i32) {
    %c0_i32 = arith.constant 0 : i32
    %c0_i32_0 = arith.constant 0 : i32
    %c0_i32_1 = arith.constant 0 : i32
    return %c0_i32, %c0_i32_0 : i32, i32
  }
  func.func @transform_2(%arg0: i32) -> (i32, i32) {
    %c0_i32 = arith.constant 0 : i32
    %c0_i32_0 = arith.constant 0 : i32
    %c0_i32_1 = arith.constant 0 : i32
    return %c0_i32, %c0_i32_0 : i32, i32
  }
  func.func @transform_3(%arg0: i32) -> (i32, i32) {
    %c0_i32 = arith.constant 0 : i32
    %c0_i32_0 = arith.constant 0 : i32
    %c0_i32_1 = arith.constant 0 : i32
    return %c0_i32, %c0_i32_0 : i32, i32
  }
  func.func @transform_4(%arg0: i32) -> (i32, i32) {
    %c0_i32 = arith.constant 0 : i32
    %c0_i32_0 = arith.constant 0 : i32
    %c0_i32_1 = arith.constant 0 : i32
    return %c0_i32, %c0_i32_0 : i32, i32
  }
  func.func @transform_5(%arg0: i32) -> (i32, i32) {
    %c0_i32 = arith.constant 0 : i32
    %c0_i32_0 = arith.constant 0 : i32
    return %arg0, %c0_i32 : i32, i32
  }
}

</mosaic_0001>

<llo_original>
// kernel: tpu_custom_call.1
$region0: #{tpu_custom_call.1}
  #allocation0 [shape = 'u32[]', space=smem, size = 0x4, offset = 0x4, fixed_abs, tag = 'smem constant byte address 0x4 - core index']
  #allocation1 [shape = 'u32[144,128]{1,0:T(1,128)}', space=vmem, size = 0x12000, scoped, tag = 'internal scratch']
  %s0 = inlined_call_operand.vmem [shape: f32[128,8], index: 0, kind: input, shape index: {}]
  %s1 = inlined_call_operand.vmem [shape: f32[8,16], index: 1, kind: input, shape index: {}]
  %s2 = inlined_call_operand.vmem [shape: f32[1,16], index: 2, kind: input, shape index: {}]
  %s3 = inlined_call_operand.vmem [shape: f32[16,32], index: 3, kind: input, shape index: {}]
  %s4 = inlined_call_operand.vmem [shape: f32[1,32], index: 4, kind: input, shape index: {}]
  %s5 = inlined_call_operand.vmem [shape: f32[128,32], index: 5, kind: output, shape index: {}]
  %s6 = sld [smem:[#allocation0]]
  $region30: #{tpu_custom_call.1} parent=0
    _
  %s8 = ssub.s32 1, %s6
  %s9 = scalar_select 0, %s8, %s6
  // Predicated region
  $region2: #{tpu_custom_call.1} parent=0 // pred_check
    _
  $region3: #{tpu_custom_call.1} parent=0 // pred_check_branch
    %11 = sbr.rel (0) target = $region5
  $region4: #{tpu_custom_call.1} parent=0 // pred_region
    _
  $region5: #{tpu_custom_call.1} parent=0 // pred_fallthru
    _
  // Predicated region
  $region6: #{tpu_custom_call.1} parent=0 // pred_check
    _
  $region7: #{tpu_custom_call.1} parent=0 // pred_check_branch
    %13 = sbr.rel (0) target = $region9
  $region8: #{tpu_custom_call.1} parent=0 // pred_region
    _
  $region9: #{tpu_custom_call.1} parent=0 // pred_fallthru
    _
  // Predicated region
  $region10: #{tpu_custom_call.1} parent=0 // pred_check
    _
  $region11: #{tpu_custom_call.1} parent=0 // pred_check_branch
    %15 = sbr.rel (0) target = $region13
  $region12: #{tpu_custom_call.1} parent=0 // pred_region
    _
  $region13: #{tpu_custom_call.1} parent=0 // pred_fallthru
    _
  // Predicated region
  $region14: #{tpu_custom_call.1} parent=0 // pred_check
    _
  $region15: #{tpu_custom_call.1} parent=0 // pred_check_branch
    %17 = sbr.rel (0) target = $region17
  $region16: #{tpu_custom_call.1} parent=0 // pred_region
    _
  $region17: #{tpu_custom_call.1} parent=0 // pred_fallthru
    _
  // Predicated region
  $region18: #{tpu_custom_call.1} parent=0 // pred_check
    _
  $region19: #{tpu_custom_call.1} parent=0 // pred_check_branch
    %19 = sbr.rel (0) target = $region21
  $region20: #{tpu_custom_call.1} parent=0 // pred_region
    _
  $region21: #{tpu_custom_call.1} parent=0 // pred_fallthru
    _
  %v20 = vld [vmem:[%s0] sm:$0xff]
  %v21 = vld [vmem:[%s0 + $0x8] sm:$0xff]
  %v22 = vld [vmem:[%s0 + $0x10] sm:$0xff]
  %v23 = vld [vmem:[%s0 + $0x18] sm:$0xff]
  %v24 = vld [vmem:[%s0 + $0x20] sm:$0xff]
  %v25 = vld [vmem:[%s0 + $0x28] sm:$0xff]
  %v26 = vld [vmem:[%s0 + $0x30] sm:$0xff]
  %v27 = vld [vmem:[%s0 + $0x38] sm:$0xff]
  %v28 = vld [vmem:[%s0 + $0x40] sm:$0xff]
  %v29 = vld [vmem:[%s0 + $0x48] sm:$0xff]
  %v30 = vld [vmem:[%s0 + $0x50] sm:$0xff]
  %v31 = vld [vmem:[%s0 + $0x58] sm:$0xff]
  %v32 = vld [vmem:[%s0 + $0x60] sm:$0xff]
  %v33 = vld [vmem:[%s0 + $0x68] sm:$0xff]
  %v34 = vld [vmem:[%s0 + $0x70] sm:$0xff]
  %v35 = vld [vmem:[%s0 + $0x78] sm:$0xff]
  %v36 = vld [vmem:[%s1] sm:$0xff]
  %v37 = vld [vmem:[%s2] sm:$0x1]
  %v39 = vlaneseq
  %v40 = vshrl.u32 %v39, 7
  %v41 = vsub.s32 0, %v40
  %v42 = vrot.slane %v37, %v41
  %vm44 = vcmask 64512
  %v46 = vsel %vm44, %v20, 0
  %v49 = vsel %vm44, %v21, 0
  %v52 = vsel %vm44, %v22, 0
  %v55 = vsel %vm44, %v23, 0
  %v58 = vsel %vm44, %v24, 0
  %v61 = vsel %vm44, %v25, 0
  %v64 = vsel %vm44, %v26, 0
  %v67 = vsel %vm44, %v27, 0
  %v70 = vsel %vm44, %v28, 0
  %v73 = vsel %vm44, %v29, 0
  %v76 = vsel %vm44, %v30, 0
  %v79 = vsel %vm44, %v31, 0
  %v82 = vsel %vm44, %v32, 0
  %v85 = vsel %vm44, %v33, 0
  %v88 = vsel %vm44, %v34, 0
  %v91 = vsel %vm44, %v35, 0
  %93 = vmatprep.subr.mxu0 0.0
  %94 = vmatpush1.msra.mxu0 0.0
  %95 = vmatprep.subr.mxu0 0.0
  %96 = vmatpush1.msra.mxu0 0.0
  %97 = vmatprep.subr.mxu0 0.0
  %98 = vmatpush1.msra.mxu0 0.0
  %99 = vmatprep.subr.mxu0 0.0
  %100 = vmatpush1.msra.mxu0 0.0
  %101 = vmatprep.subr.mxu0 0.0
  %102 = vmatpush1.msra.mxu0 0.0
  %103 = vmatprep.subr.mxu0 0.0
  %104 = vmatpush1.msra.mxu0 0.0
  %105 = vmatprep.subr.mxu0 0.0
  %106 = vmatpush1.msra.mxu0 0.0
  %107 = vmatprep.subr.mxu0 0.0
  %108 = vmatpush1.msra.mxu0 0.0
  %109 = vmatprep.subr.mxu0 0.0
  %110 = vmatpush1.msra.mxu0 0.0
  %111 = vmatprep.subr.mxu0 0.0
  %112 = vmatpush1.msra.mxu0 0.0
  %113 = vmatprep.subr.mxu0 0.0
  %114 = vmatpush1.msra.mxu0 0.0
  %115 = vmatprep.subr.mxu0 0.0
  %116 = vmatpush1.msra.mxu0 0.0
  %117 = vmatprep.subr.mxu0 0.0
  %118 = vmatpush1.msra.mxu0 0.0
  %119 = vmatprep.subr.mxu0 0.0
  %120 = vmatpush1.msra.mxu0 0.0
  %121 = vmatprep.subr.mxu0 0.0
  %122 = vmatpush1.msra.mxu0 0.0
  %123 = vmatprep.subr.mxu0 0.0
  %124 = vmatpush1.msra.mxu0 %v36
  %125 = vmatprep.subr.mxu0 0.0
  %126 = vmatpush2.msra.mxu0 0.0
  %127 = vmatprep.subr.mxu0 0.0
  %128 = vmatpush2.msra.mxu0 0.0
  %129 = vmatprep.subr.mxu0 0.0
  %130 = vmatpush2.msra.mxu0 0.0
  %131 = vmatprep.subr.mxu0 0.0
  %132 = vmatpush2.msra.mxu0 0.0
  %133 = vmatprep.subr.mxu0 0.0
  %134 = vmatpush2.msra.mxu0 0.0
  %135 = vmatprep.subr.mxu0 0.0
  %136 = vmatpush2.msra.mxu0 0.0
  %137 = vmatprep.subr.mxu0 0.0
  %138 = vmatpush2.msra.mxu0 0.0
  %139 = vmatprep.subr.mxu0 0.0
  %140 = vmatpush2.msra.mxu0 0.0
  %141 = vmatprep.subr.mxu0 0.0
  %142 = vmatpush2.msra.mxu0 0.0
  %143 = vmatprep.subr.mxu0 0.0
  %144 = vmatpush2.msra.mxu0 0.0
  %145 = vmatprep.subr.mxu0 0.0
  %146 = vmatpush2.msra.mxu0 0.0
  %147 = vmatprep.subr.mxu0 0.0
  %148 = vmatpush2.msra.mxu0 0.0
  %149 = vmatprep.subr.mxu0 0.0
  %150 = vmatpush2.msra.mxu0 0.0
  %151 = vmatprep.subr.mxu0 0.0
  %152 = vmatpush2.msra.mxu0 0.0
  %153 = vmatprep.subr.mxu0 0.0
  %154 = vmatpush2.msra.mxu0 0.0
  %155 = vmatprep.subr.mxu0 0.0
  %156 = vmatpush2.msra.mxu0 0.0
  %157 = vmatprep.mubr.f32.mxu0 0.0
  %158 = vmatmul.mubr.f32.gmra.mxu0 %v46
  %v159 = vpop.f32.mrf.mxu0
  %v160 = vadd.f32 %v42, %v159
  %v161 = vpop.f32.mrf.mxu0
  %162 = vmatprep.mubr.f32.mxu0 0.0
  %163 = vmatmul.mubr.f32.gmra.mxu0 %v49
  %v164 = vpop.f32.mrf.mxu0
  %v165 = vadd.f32 %v42, %v164
  %v166 = vpop.f32.mrf.mxu0
  %167 = vmatprep.mubr.f32.mxu0 0.0
  %168 = vmatmul.mubr.f32.gmra.mxu0 %v52
  %v169 = vpop.f32.mrf.mxu0
  %v170 = vadd.f32 %v42, %v169
  %v171 = vpop.f32.mrf.mxu0
  %172 = vmatprep.mubr.f32.mxu0 0.0
  %173 = vmatmul.mubr.f32.gmra.mxu0 %v55
  %v174 = vpop.f32.mrf.mxu0
  %v175 = vadd.f32 %v42, %v174
  %v176 = vpop.f32.mrf.mxu0
  %177 = vmatprep.mubr.f32.mxu0 0.0
  %178 = vmatmul.mubr.f32.gmra.mxu0 %v58
  %v179 = vpop.f32.mrf.mxu0
  %v180 = vadd.f32 %v42, %v179
  %v181 = vpop.f32.mrf.mxu0
  %182 = vmatprep.mubr.f32.mxu0 0.0
  %183 = vmatmul.mubr.f32.gmra.mxu0 %v61
  %v184 = vpop.f32.mrf.mxu0
  %v185 = vadd.f32 %v42, %v184
  %v186 = vpop.f32.mrf.mxu0
  %187 = vmatprep.mubr.f32.mxu0 0.0
  %188 = vmatmul.mubr.f32.gmra.mxu0 %v64
  %v189 = vpop.f32.mrf.mxu0
  %v190 = vadd.f32 %v42, %v189
  %v191 = vpop.f32.mrf.mxu0
  %192 = vmatprep.mubr.f32.mxu0 0.0
  %193 = vmatmul.mubr.f32.gmra.mxu0 %v67
  %v194 = vpop.f32.mrf.mxu0
  %v195 = vadd.f32 %v42, %v194
  %v196 = vpop.f32.mrf.mxu0
  %197 = vmatprep.mubr.f32.mxu0 0.0
  %198 = vmatmul.mubr.f32.gmra.mxu0 %v70
  %v199 = vpop.f32.mrf.mxu0
  %v200 = vadd.f32 %v42, %v199
  %v201 = vpop.f32.mrf.mxu0
  %202 = vmatprep.mubr.f32.mxu0 0.0
  %203 = vmatmul.mubr.f32.gmra.mxu0 %v73
  %v204 = vpop.f32.mrf.mxu0
  %v205 = vadd.f32 %v42, %v204
  %v206 = vpop.f32.mrf.mxu0
  %207 = vmatprep.mubr.f32.mxu0 0.0
  %208 = vmatmul.mubr.f32.gmra.mxu0 %v76
  %v209 = vpop.f32.mrf.mxu0
  %v210 = vadd.f32 %v42, %v209
  %v211 = vpop.f32.mrf.mxu0
  %212 = vmatprep.mubr.f32.mxu0 0.0
  %213 = vmatmul.mubr.f32.gmra.mxu0 %v79
  %v214 = vpop.f32.mrf.mxu0
  %v215 = vadd.f32 %v42, %v214
  %v216 = vpop.f32.mrf.mxu0
  %217 = vmatprep.mubr.f32.mxu0 0.0
  %218 = vmatmul.mubr.f32.gmra.mxu0 %v82
  %v219 = vpop.f32.mrf.mxu0
  %v220 = vadd.f32 %v42, %v219
  %v221 = vpop.f32.mrf.mxu0
  %222 = vmatprep.mubr.f32.mxu0 0.0
  %223 = vmatmul.mubr.f32.gmra.mxu0 %v85
  %v224 = vpop.f32.mrf.mxu0
  %v225 = vadd.f32 %v42, %v224
  %v226 = vpop.f32.mrf.mxu0
  %227 = vmatprep.mubr.f32.mxu0 0.0
  %228 = vmatmul.mubr.f32.gmra.mxu0 %v88
  %v229 = vpop.f32.mrf.mxu0
  %v230 = vadd.f32 %v42, %v229
  %v231 = vpop.f32.mrf.mxu0
  %232 = vmatprep.mubr.f32.mxu0 0.0
  %233 = vmatmul.mubr.f32.gmra.mxu0 %v91
  %v234 = vpop.f32.mrf.mxu0
  %v235 = vadd.f32 %v42, %v234
  %v236 = vpop.f32.mrf.mxu0
  %237 = vdwg.mxu0
  %v238 = vmax.f32 %v160, 0.0
  %v239 = vmax.f32 %v165, 0.0
  %v240 = vmax.f32 %v170, 0.0
  %v241 = vmax.f32 %v175, 0.0
  %v242 = vmax.f32 %v180, 0.0
  %v243 = vmax.f32 %v185, 0.0
  %v244 = vmax.f32 %v190, 0.0
  %v245 = vmax.f32 %v195, 0.0
  %v246 = vmax.f32 %v200, 0.0
  %v247 = vmax.f32 %v205, 0.0
  %v248 = vmax.f32 %v210, 0.0
  %v249 = vmax.f32 %v215, 0.0
  %v250 = vmax.f32 %v220, 0.0
  %v251 = vmax.f32 %v225, 0.0
  %v252 = vmax.f32 %v230, 0.0
  %v253 = vmax.f32 %v235, 0.0
  %v254 = vld [vmem:[%s3] sm:$0xff]
  %v255 = vld [vmem:[%s3 + $0x8] sm:$0xff]
  %v256 = vld [vmem:[%s4] sm:$0x1]
  %v258 = vlaneseq
  %v259 = vshrl.u32 %v258, 7
  %v260 = vsub.s32 0, %v259
  %v261 = vrot.slane %v256, %v260
  %vm263 = vcmask 130048
  %v265 = vsel %vm263, %v238, 0
  %v268 = vsel %vm263, %v239, 0
  %v271 = vsel %vm263, %v240, 0
  %v274 = vsel %vm263, %v241, 0
  %v277 = vsel %vm263, %v242, 0
  %v280 = vsel %vm263, %v243, 0
  %v283 = vsel %vm263, %v244, 0
  %v286 = vsel %vm263, %v245, 0
  %v289 = vsel %vm263, %v246, 0
  %v292 = vsel %vm263, %v247, 0
  %v295 = vsel %vm263, %v248, 0
  %v298 = vsel %vm263, %v249, 0
  %v301 = vsel %vm263, %v250, 0
  %v304 = vsel %vm263, %v251, 0
  %v307 = vsel %vm263, %v252, 0
  %v310 = vsel %vm263, %v253, 0
  %312 = vmatprep.subr.mxu0 0.0
  %313 = vmatpush1.msra.mxu0 0.0
  %314 = vmatprep.subr.mxu0 0.0
  %315 = vmatpush1.msra.mxu0 0.0
  %316 = vmatprep.subr.mxu0 0.0
  %317 = vmatpush1.msra.mxu0 0.0
  %318 = vmatprep.subr.mxu0 0.0
  %319 = vmatpush1.msra.mxu0 0.0
  %320 = vmatprep.subr.mxu0 0.0
  %321 = vmatpush1.msra.mxu0 0.0
  %322 = vmatprep.subr.mxu0 0.0
  %323 = vmatpush1.msra.mxu0 0.0
  %324 = vmatprep.subr.mxu0 0.0
  %325 = vmatpush1.msra.mxu0 0.0
  %326 = vmatprep.subr.mxu0 0.0
  %327 = vmatpush1.msra.mxu0 0.0
  %328 = vmatprep.subr.mxu0 0.0
  %329 = vmatpush1.msra.mxu0 0.0
  %330 = vmatprep.subr.mxu0 0.0
  %331 = vmatpush1.msra.mxu0 0.0
  %332 = vmatprep.subr.mxu0 0.0
  %333 = vmatpush1.msra.mxu0 0.0
  %334 = vmatprep.subr.mxu0 0.0
  %335 = vmatpush1.msra.mxu0 0.0
  %336 = vmatprep.subr.mxu0 0.0
  %337 = vmatpush1.msra.mxu0 0.0
  %338 = vmatprep.subr.mxu0 0.0
  %339 = vmatpush1.msra.mxu0 0.0
  %340 = vmatprep.subr.mxu0 0.0
  %341 = vmatpush1.msra.mxu0 %v255
  %342 = vmatprep.subr.mxu0 0.0
  %343 = vmatpush1.msra.mxu0 %v254
  %344 = vmatprep.subr.mxu0 0.0
  %345 = vmatpush2.msra.mxu0 0.0
  %346 = vmatprep.subr.mxu0 0.0
  %347 = vmatpush2.msra.mxu0 0.0
  %348 = vmatprep.subr.mxu0 0.0
  %349 = vmatpush2.msra.mxu0 0.0
  %350 = vmatprep.subr.mxu0 0.0
  %351 = vmatpush2.msra.mxu0 0.0
  %352 = vmatprep.subr.mxu0 0.0
  %353 = vmatpush2.msra.mxu0 0.0
  %354 = vmatprep.subr.mxu0 0.0
  %355 = vmatpush2.msra.mxu0 0.0
  %356 = vmatprep.subr.mxu0 0.0
  %357 = vmatpush2.msra.mxu0 0.0
  %358 = vmatprep.subr.mxu0 0.0
  %359 = vmatpush2.msra.mxu0 0.0
  %360 = vmatprep.subr.mxu0 0.0
  %361 = vmatpush2.msra.mxu0 0.0
  %362 = vmatprep.subr.mxu0 0.0
  %363 = vmatpush2.msra.mxu0 0.0
  %364 = vmatprep.subr.mxu0 0.0
  %365 = vmatpush2.msra.mxu0 0.0
  %366 = vmatprep.subr.mxu0 0.0
  %367 = vmatpush2.msra.mxu0 0.0
  %368 = vmatprep.subr.mxu0 0.0
  %369 = vmatpush2.msra.mxu0 0.0
  %370 = vmatprep.subr.mxu0 0.0
  %371 = vmatpush2.msra.mxu0 0.0
  %372 = vmatprep.subr.mxu0 0.0
  %373 = vmatpush2.msra.mxu0 0.0
  %374 = vmatprep.subr.mxu0 0.0
  %375 = vmatpush2.msra.mxu0 0.0
  %376 = vmatprep.mubr.f32.mxu0 0.0
  %377 = vmatmul.mubr.f32.gmra.mxu0 %v265
  %v378 = vpop.f32.mrf.mxu0
  %v379 = vadd.f32 %v261, %v378
  %v380 = vpop.f32.mrf.mxu0
  %381 = vmatprep.mubr.f32.mxu0 0.0
  %382 = vmatmul.mubr.f32.gmra.mxu0 %v268
  %v383 = vpop.f32.mrf.mxu0
  %v384 = vadd.f32 %v261, %v383
  %v385 = vpop.f32.mrf.mxu0
  %386 = vmatprep.mubr.f32.mxu0 0.0
  %387 = vmatmul.mubr.f32.gmra.mxu0 %v271
  %v388 = vpop.f32.mrf.mxu0
  %v389 = vadd.f32 %v261, %v388
  %v390 = vpop.f32.mrf.mxu0
  %391 = vmatprep.mubr.f32.mxu0 0.0
  %392 = vmatmul.mubr.f32.gmra.mxu0 %v274
  %v393 = vpop.f32.mrf.mxu0
  %v394 = vadd.f32 %v261, %v393
  %v395 = vpop.f32.mrf.mxu0
  %396 = vmatprep.mubr.f32.mxu0 0.0
  %397 = vmatmul.mubr.f32.gmra.mxu0 %v277
  %v398 = vpop.f32.mrf.mxu0
  %v399 = vadd.f32 %v261, %v398
  %v400 = vpop.f32.mrf.mxu0
  %401 = vmatprep.mubr.f32.mxu0 0.0
  %402 = vmatmul.mubr.f32.gmra.mxu0 %v280
  %v403 = vpop.f32.mrf.mxu0
  %v404 = vadd.f32 %v261, %v403
  %v405 = vpop.f32.mrf.mxu0
  %406 = vmatprep.mubr.f32.mxu0 0.0
  %407 = vmatmul.mubr.f32.gmra.mxu0 %v283
  %v408 = vpop.f32.mrf.mxu0
  %v409 = vadd.f32 %v261, %v408
  %v410 = vpop.f32.mrf.mxu0
  %411 = vmatprep.mubr.f32.mxu0 0.0
  %412 = vmatmul.mubr.f32.gmra.mxu0 %v286
  %v413 = vpop.f32.mrf.mxu0
  %v414 = vadd.f32 %v261, %v413
  %v415 = vpop.f32.mrf.mxu0
  %416 = vmatprep.mubr.f32.mxu0 0.0
  %417 = vmatmul.mubr.f32.gmra.mxu0 %v289
  %v418 = vpop.f32.mrf.mxu0
  %v419 = vadd.f32 %v261, %v418
  %v420 = vpop.f32.mrf.mxu0
  %421 = vmatprep.mubr.f32.mxu0 0.0
  %422 = vmatmul.mubr.f32.gmra.mxu0 %v292
  %v423 = vpop.f32.mrf.mxu0
  %v424 = vadd.f32 %v261, %v423
  %v425 = vpop.f32.mrf.mxu0
  %426 = vmatprep.mubr.f32.mxu0 0.0
  %427 = vmatmul.mubr.f32.gmra.mxu0 %v295
  %v428 = vpop.f32.mrf.mxu0
  %v429 = vadd.f32 %v261, %v428
  %v430 = vpop.f32.mrf.mxu0
  %431 = vmatprep.mubr.f32.mxu0 0.0
  %432 = vmatmul.mubr.f32.gmra.mxu0 %v298
  %v433 = vpop.f32.mrf.mxu0
  %v434 = vadd.f32 %v261, %v433
  %v435 = vpop.f32.mrf.mxu0
  %436 = vmatprep.mubr.f32.mxu0 0.0
  %437 = vmatmul.mubr.f32.gmra.mxu0 %v301
  %v438 = vpop.f32.mrf.mxu0
  %v439 = vadd.f32 %v261, %v438
  %v440 = vpop.f32.mrf.mxu0
  %441 = vmatprep.mubr.f32.mxu0 0.0
  %442 = vmatmul.mubr.f32.gmra.mxu0 %v304
  %v443 = vpop.f32.mrf.mxu0
  %v444 = vadd.f32 %v261, %v443
  %v445 = vpop.f32.mrf.mxu0
  %446 = vmatprep.mubr.f32.mxu0 0.0
  %447 = vmatmul.mubr.f32.gmra.mxu0 %v307
  %v448 = vpop.f32.mrf.mxu0
  %v449 = vadd.f32 %v261, %v448
  %v450 = vpop.f32.mrf.mxu0
  %451 = vmatprep.mubr.f32.mxu0 0.0
  %452 = vmatmul.mubr.f32.gmra.mxu0 %v310
  %v453 = vpop.f32.mrf.mxu0
  %v454 = vadd.f32 %v261, %v453
  %v455 = vpop.f32.mrf.mxu0
  %456 = vdwg.mxu0
  %v457 = vmax.f32 %v379, 0.0
  %v458 = vmax.f32 %v384, 0.0
  %v459 = vmax.f32 %v389, 0.0
  %v460 = vmax.f32 %v394, 0.0
  %v461 = vmax.f32 %v399, 0.0
  %v462 = vmax.f32 %v404, 0.0
  %v463 = vmax.f32 %v409, 0.0
  %v464 = vmax.f32 %v414, 0.0
  %v465 = vmax.f32 %v419, 0.0
  %v466 = vmax.f32 %v424, 0.0
  %v467 = vmax.f32 %v429, 0.0
  %v468 = vmax.f32 %v434, 0.0
  %v469 = vmax.f32 %v439, 0.0
  %v470 = vmax.f32 %v444, 0.0
  %v471 = vmax.f32 %v449, 0.0
  %v472 = vmax.f32 %v454, 0.0
  %vm473 = vcmask 261120
  %474 = vst.msk [vmem:[%s5] sm:$0xff] %vm473, %v457
  %475 = vst.msk [vmem:[%s5 + $0x8] sm:$0xff] %vm473, %v458
  %476 = vst.msk [vmem:[%s5 + $0x10] sm:$0xff] %vm473, %v459
  %477 = vst.msk [vmem:[%s5 + $0x18] sm:$0xff] %vm473, %v460
  %478 = vst.msk [vmem:[%s5 + $0x20] sm:$0xff] %vm473, %v461
  %479 = vst.msk [vmem:[%s5 + $0x28] sm:$0xff] %vm473, %v462
  %480 = vst.msk [vmem:[%s5 + $0x30] sm:$0xff] %vm473, %v463
  %481 = vst.msk [vmem:[%s5 + $0x38] sm:$0xff] %vm473, %v464
  %482 = vst.msk [vmem:[%s5 + $0x40] sm:$0xff] %vm473, %v465
  %483 = vst.msk [vmem:[%s5 + $0x48] sm:$0xff] %vm473, %v466
  %484 = vst.msk [vmem:[%s5 + $0x50] sm:$0xff] %vm473, %v467
  %485 = vst.msk [vmem:[%s5 + $0x58] sm:$0xff] %vm473, %v468
  %486 = vst.msk [vmem:[%s5 + $0x60] sm:$0xff] %vm473, %v469
  %487 = vst.msk [vmem:[%s5 + $0x68] sm:$0xff] %vm473, %v470
  %488 = vst.msk [vmem:[%s5 + $0x70] sm:$0xff] %vm473, %v471
  %489 = vst.msk [vmem:[%s5 + $0x78] sm:$0xff] %vm473, %v472
  // Predicated region
  $region22: #{tpu_custom_call.1} parent=0 // pred_check
    _
  $region23: #{tpu_custom_call.1} parent=0 // pred_check_branch
    %491 = sbr.rel (0) target = $region25
  $region24: #{tpu_custom_call.1} parent=0 // pred_region
    _
  $region25: #{tpu_custom_call.1} parent=0 // pred_fallthru
    _
  // Predicated region
  $region26: #{tpu_custom_call.1} parent=0 // pred_check
    _
  $region27: #{tpu_custom_call.1} parent=0 // pred_check_branch
    %493 = sbr.rel (0) target = $region29
  $region28: #{tpu_custom_call.1} parent=0 // pred_region
    _
  $region29: #{tpu_custom_call.1} parent=0 // pred_fallthru
    _

</llo_original>
